<compile_context>
chip_gen: v5e
topology: v5e:2x2
jax: 0.10.0
libtpu: 0.0.40
codegen_flags: <defaults>
</compile_context>

<pallas_src>
import jax
import jax.numpy as jnp
from jax.experimental import pallas as pl
from jax.experimental.pallas import tpu as pltpu

_LANES = 128
_ACC_SUBLANES = 8
_MAX_BLOCK_ROWS = 2048          # 2048 x 128 f32 = 1 MiB per pipeline buffer
_FAST_PATH_ELEMS = _ACC_SUBLANES * _LANES   # below this, plain XLA is cheaper


def _row_align_for_dtype(dtype):
    """Sublane granularity for the block row dimension (dtype min-tile)."""
    itemsize = jnp.dtype(dtype).itemsize
    return {4: 8, 2: 16, 1: 32}.get(itemsize, 8)


def _make_minmax_kernel(n_valid, block_rows, acc_rows, lanes, steps,
                        total_blocks, needs_mask):
    """Kernel over grid (num_parallel_cores, steps)."""
    k_fold = block_rows // acc_rows

    def kernel(x_ref, min_ref, max_ref):
        c = pl.program_id(0)          # parallel (per-core) axis
        i = pl.program_id(1)          # sequential reduction axis

        # Each core initializes its own resident partial-result block once.
        @pl.when(i == 0)
        def _init():
            min_ref[...] = jnp.full(min_ref.shape, jnp.inf, dtype=jnp.float32)
            max_ref[...] = jnp.full(max_ref.shape, -jnp.inf, dtype=jnp.float32)

        tile = x_ref[...].astype(jnp.float32)       # (block_rows, lanes)

        def _accumulate(tmin_tile, tmax_tile):
            # Fold (block_rows, lanes) -> (acc_rows, lanes): pure VALU
            # elementwise min/max across vregs (no XLU cross-lane reduce).
            tmin = tmin_tile.reshape(k_fold, acc_rows, lanes).min(axis=0)
            tmax = tmax_tile.reshape(k_fold, acc_rows, lanes).max(axis=0)
            min_ref[...] = jnp.minimum(min_ref[...], tmin.reshape(min_ref.shape))
            max_ref[...] = jnp.maximum(max_ref[...], tmax.reshape(max_ref.shape))

        if not needs_mask:
            # Every block is fully valid: cheapest path (2 VALU ops / vreg).
            _accumulate(tile, tile)
        else:
            g = c * steps + i                       # global block index
            is_last = g == (total_blocks - 1)

            @pl.when(jnp.logical_not(is_last))
            def _full_block():
                _accumulate(tile, tile)

            @pl.when(is_last)
            def _partial_block():
                base = g * (block_rows * lanes)
                row_ids = jax.lax.broadcasted_iota(jnp.int32, tile.shape, 0)
                lane_ids = jax.lax.broadcasted_iota(jnp.int32, tile.shape, 1)
                elem_ids = base + row_ids * lanes + lane_ids
                valid = elem_ids < n_valid
                _accumulate(jnp.where(valid, tile, jnp.inf),
                            jnp.where(valid, tile, -jnp.inf))

    return kernel


def minmax_observer_forward(x_orig, min_val, max_val,
                            max_block_rows=_MAX_BLOCK_ROWS):
    """Functional equivalent of MinMaxObserver.forward (lsq disabled).

    Returns (x_orig, new_min_val, new_max_val)."""
    if x_orig.size == 0:
        return x_orig, min_val, max_val

    n = x_orig.size
    min_val_f = min_val.astype(jnp.float32)
    max_val_f = max_val.astype(jnp.float32)

    # Tiny inputs: pipeline setup dominates; plain XLA reduce is strictly faster.
    if n < _FAST_PATH_ELEMS:
        xf = x_orig.astype(jnp.float32)
        return (x_orig,
                jnp.minimum(jnp.min(xf), min_val_f),
                jnp.maximum(jnp.max(xf), max_val_f))

    flat = x_orig.reshape(-1)                       # free (contiguous bitcast)

    # Rare ragged case: pad to a lane multiple. Pad values are masked in-kernel,
    # so the fill value is irrelevant (NaN-safe).
    if n % _LANES != 0:
        flat = jnp.pad(flat, (0, _LANES - (n % _LANES)))
    rows = flat.shape[0] // _LANES
    x2d = flat.reshape(rows, _LANES)                # native dtype, lane-dense

    row_align = _row_align_for_dtype(x_orig.dtype)
    if rows >= row_align:
        block_rows = min(max_block_rows, rows)
        block_rows = max(row_align, (block_rows // row_align) * row_align)
    else:
        block_rows = rows                           # single full-extent block

    acc_rows = _ACC_SUBLANES if block_rows % _ACC_SUBLANES == 0 else block_rows

    total_blocks = pl.cdiv(rows, block_rows)
    if total_blocks >= 2 and total_blocks % 2 == 0:
        num_par, steps = 2, total_blocks // 2       # v7x: one half per TC
    else:
        num_par, steps = 1, total_blocks

    needs_mask = (total_blocks * block_rows * _LANES) != n

    kernel = _make_minmax_kernel(n, block_rows, acc_rows, _LANES, steps,
                                 total_blocks, needs_mask)

    part_shape = jax.ShapeDtypeStruct((num_par, acc_rows, _LANES), jnp.float32)
    out_block = pl.BlockSpec((1, acc_rows, _LANES), lambda c, i: (c, 0, 0))

    min_part, max_part = pl.pallas_call(
        kernel,
        out_shape=(part_shape, part_shape),
        grid=(num_par, steps),
        in_specs=[pl.BlockSpec((block_rows, _LANES),
                               lambda c, i: (c * steps + i, 0))],
        out_specs=(out_block, out_block),
        compiler_params=pltpu.CompilerParams(
            dimension_semantics=("parallel", "arbitrary")),
    )(x2d)

    # Final tiny reduce + fold of the running state (done once, in XLA).
    new_min = jnp.minimum(jnp.min(min_part), min_val_f)
    new_max = jnp.maximum(jnp.max(max_part), max_val_f)
    return x_orig, new_min, new_max


class MinMaxObserver:
    """Thin stateful wrapper mirroring the PyTorch module's buffers."""

    def __init__(self, bit=8):
        self.bit = bit
        self.eps = jnp.array([jnp.finfo(jnp.float32).eps], dtype=jnp.float32)
        self.min_val = jnp.array(jnp.inf, dtype=jnp.float32)
        self.max_val = jnp.array(-jnp.inf, dtype=jnp.float32)
        self.input_shape = None
        self.lsq_enabled = False

    def forward(self, x_orig):
        self.input_shape = x_orig.shape
        out, new_min, new_max = minmax_observer_forward(
            x_orig, self.min_val, self.max_val)
        self.min_val = new_min
        self.max_val = new_max
        return out

    def calculate_qparams(self):
        quant_min, quant_max = (-127, 127)
        if self.min_val >= 0:
            quant_min, quant_max = (0, 255)
        self.quant_min, self.quant_max = quant_min, quant_max
        max_val_pos = jnp.maximum(jnp.abs(self.min_val), self.max_val)
        # eps clamp so an all-zero tensor never yields scale == 0
        self.scale = jnp.maximum(max_val_pos / quant_max, self.eps[0])
        return self.scale


if __name__ == "__main__":
    key = jax.random.PRNGKey(0)

    # --- test 1: f32 NCHW activation, running-state update across two calls ---
    x = jax.random.normal(key, (2, 4, 16, 16), dtype=jnp.float32)
    obs = MinMaxObserver(bit=8)
    y = obs.forward(x)
    jax.block_until_ready(y)
    jax.block_until_ready(obs.min_val)
    jax.block_until_ready(obs.max_val)

    ref_min = jnp.min(x)
    ref_max = jnp.max(x)
    assert jnp.allclose(obs.min_val, ref_min), (obs.min_val, ref_min)
    assert jnp.allclose(obs.max_val, ref_max), (obs.max_val, ref_max)
    assert jnp.array_equal(y, x)                    # forward returns x unchanged

    x2 = 3.0 * jax.random.normal(jax.random.PRNGKey(1), (2, 4, 16, 16),
                                 dtype=jnp.float32)
    _ = obs.forward(x2)
    jax.block_until_ready(obs.min_val)
    ref_min2 = jnp.minimum(jnp.min(x2), ref_min)
    ref_max2 = jnp.maximum(jnp.max(x2), ref_max)
    assert jnp.allclose(obs.min_val, ref_min2)
    assert jnp.allclose(obs.max_val, ref_max2)
    _ = obs.calculate_qparams()

    # --- test 2: bf16 input -> in-kernel widening to f32 (no host-side cast) ---
    x_bf16 = jax.random.normal(jax.random.PRNGKey(2), (2, 4, 16, 16),
                               dtype=jnp.float32).astype(jnp.bfloat16)
    obs_b = MinMaxObserver(bit=8)
    _ = obs_b.forward(x_bf16)
    jax.block_until_ready(obs_b.min_val)
    assert jnp.allclose(obs_b.min_val, jnp.min(x_bf16.astype(jnp.float32)))
    assert jnp.allclose(obs_b.max_val, jnp.max(x_bf16.astype(jnp.float32)))

    # --- test 3: ragged element count (n % 128 != 0) with a small block size to
    #     exercise the multi-block grid, the 2-way parallel split and the
    #     in-kernel tail masking paths ---
    x_rag = jax.random.normal(jax.random.PRNGKey(3), (3, 5, 7, 11),
                              dtype=jnp.float32)
    _, m3, M3 = minmax_observer_forward(
        x_rag,
        jnp.array(jnp.inf, dtype=jnp.float32),
        jnp.array(-jnp.inf, dtype=jnp.float32),
        max_block_rows=8)
    jax.block_until_ready(m3)
    assert jnp.allclose(m3, jnp.min(x_rag)), (m3, jnp.min(x_rag))
    assert jnp.allclose(M3, jnp.max(x_rag)), (M3, jnp.max(x_rag))

    print("KERNEL_OK")
</pallas_src>

<mosaic_0001>
module attributes {stable_mosaic.version = 11 : i64} {
  func.func @kernel(%arg0: i32, %arg1: i32, %arg2: memref<16x128xf32, #tpu.memory_space<vmem>>, %arg3: memref<1x8x128xf32, #tpu.memory_space<vmem>>, %arg4: memref<1x8x128xf32, #tpu.memory_space<vmem>>) attributes {dimension_semantics = [#tpu.dimension_semantics<parallel>, #tpu.dimension_semantics<arbitrary>], iteration_bounds = array<i64: 1, 1>, scalar_prefetch = 0 : i64, scratch_operands = 0 : i64, tpu.core_type = #tpu.core_type<tc>, window_params = [{transform_indices = @transform_0, window_bounds = array<i64: 16, 128>}, {transform_indices = @transform_1, window_bounds = array<i64: 1, 8, 128>}, {transform_indices = @transform_2, window_bounds = array<i64: 1, 8, 128>}]} {
    %c0_i32 = arith.constant 0 : i32
    %0 = arith.cmpi eq, %arg1, %c0_i32 : i32
    %1 = arith.extui %0 : i1 to i32
    %c0_i32_0 = arith.constant 0 : i32
    %2 = arith.cmpi ne, %1, %c0_i32_0 : i32
    scf.if %2 {
      %cst_15 = arith.constant 0x7F800000 : f32
      %16 = vector.broadcast %cst_15 : f32 to vector<1x8x128xf32>
      %c0_16 = arith.constant 0 : index
      %c0_17 = arith.constant 0 : index
      %c0_18 = arith.constant 0 : index
      %17 = vector.load %arg3[%c0_16, %c0_17, %c0_18] : memref<1x8x128xf32, #tpu.memory_space<vmem>>, vector<1x8x128xf32>
      tpu.vector_store %arg3[%c0_16, %c0_17, %c0_18], %16 {strides = array<i32>} : memref<1x8x128xf32, #tpu.memory_space<vmem>>, vector<1x8x128xf32>,
      %cst_19 = arith.constant 0xFF800000 : f32
      %18 = vector.broadcast %cst_19 : f32 to vector<1x8x128xf32>
      %c0_20 = arith.constant 0 : index
      %c0_21 = arith.constant 0 : index
      %c0_22 = arith.constant 0 : index
      %19 = vector.load %arg4[%c0_20, %c0_21, %c0_22] : memref<1x8x128xf32, #tpu.memory_space<vmem>>, vector<1x8x128xf32>
      tpu.vector_store %arg4[%c0_20, %c0_21, %c0_22], %18 {strides = array<i32>} : memref<1x8x128xf32, #tpu.memory_space<vmem>>, vector<1x8x128xf32>,
    } else {
    }
    %c0 = arith.constant 0 : index
    %c0_1 = arith.constant 0 : index
    %3 = vector.load %arg2[%c0, %c0_1] : memref<16x128xf32, #tpu.memory_space<vmem>>, vector<16x128xf32>
    %4 = vector.shape_cast %3 : vector<16x128xf32> to vector<2x8x128xf32>
    %cst = arith.constant dense<0x7F800000> : vector<8x128xf32>
    %5 = vector.multi_reduction <minimumf>, %4, %cst [0] : vector<2x8x128xf32> to vector<8x128xf32>
    %6 = vector.shape_cast %3 : vector<16x128xf32> to vector<2x8x128xf32>
    %cst_2 = arith.constant dense<0xFF800000> : vector<8x128xf32>
    %7 = vector.multi_reduction <maximumf>, %6, %cst_2 [0] : vector<2x8x128xf32> to vector<8x128xf32>
    %c0_3 = arith.constant 0 : index
    %c0_4 = arith.constant 0 : index
    %c0_5 = arith.constant 0 : index
    %8 = vector.load %arg3[%c0_3, %c0_4, %c0_5] : memref<1x8x128xf32, #tpu.memory_space<vmem>>, vector<1x8x128xf32>
    %9 = vector.shape_cast %5 : vector<8x128xf32> to vector<1x8x128xf32>
    %10 = arith.minimumf %8, %9 : vector<1x8x128xf32>
    %c0_6 = arith.constant 0 : index
    %c0_7 = arith.constant 0 : index
    %c0_8 = arith.constant 0 : index
    %11 = vector.load %arg3[%c0_6, %c0_7, %c0_8] : memref<1x8x128xf32, #tpu.memory_space<vmem>>, vector<1x8x128xf32>
    tpu.vector_store %arg3[%c0_6, %c0_7, %c0_8], %10 {strides = array<i32>} : memref<1x8x128xf32, #tpu.memory_space<vmem>>, vector<1x8x128xf32>,
    %c0_9 = arith.constant 0 : index
    %c0_10 = arith.constant 0 : index
    %c0_11 = arith.constant 0 : index
    %12 = vector.load %arg4[%c0_9, %c0_10, %c0_11] : memref<1x8x128xf32, #tpu.memory_space<vmem>>, vector<1x8x128xf32>
    %13 = vector.shape_cast %7 : vector<8x128xf32> to vector<1x8x128xf32>
    %14 = arith.maximumf %12, %13 : vector<1x8x128xf32>
    %c0_12 = arith.constant 0 : index
    %c0_13 = arith.constant 0 : index
    %c0_14 = arith.constant 0 : index
    %15 = vector.load %arg4[%c0_12, %c0_13, %c0_14] : memref<1x8x128xf32, #tpu.memory_space<vmem>>, vector<1x8x128xf32>
    tpu.vector_store %arg4[%c0_12, %c0_13, %c0_14], %14 {strides = array<i32>} : memref<1x8x128xf32, #tpu.memory_space<vmem>>, vector<1x8x128xf32>,
    return
  }
  func.func @transform_0(%arg0: i32, %arg1: i32) -> (i32, i32) {
    %c1_i32 = arith.constant 1 : i32
    %0 = arith.muli %arg0, %c1_i32 : i32
    %1 = arith.addi %0, %arg1 : i32
    %c0_i32 = arith.constant 0 : i32
    %c0_i32_0 = arith.constant 0 : i32
    return %1, %c0_i32 : i32, i32
  }
  func.func @transform_1(%arg0: i32, %arg1: i32) -> (i32, i32, i32) {
    %c0_i32 = arith.constant 0 : i32
    %c0_i32_0 = arith.constant 0 : i32
    %c0_i32_1 = arith.constant 0 : i32
    return %arg0, %c0_i32, %c0_i32_0 : i32, i32, i32
  }
  func.func @transform_2(%arg0: i32, %arg1: i32) -> (i32, i32, i32) {
    %c0_i32 = arith.constant 0 : i32
    %c0_i32_0 = arith.constant 0 : i32
    %c0_i32_1 = arith.constant 0 : i32
    return %arg0, %c0_i32, %c0_i32_0 : i32, i32, i32
  }
}

</mosaic_0001>

<llo_original>
// kernel: tpu_custom_call.1
$region0: #{tpu_custom_call.1}
  #allocation0 [shape = 'u32[]', space=smem, size = 0x4, offset = 0x4, fixed_abs, tag = 'smem constant byte address 0x4 - core index']
  #allocation1 [shape = 'u32[72,128]{1,0:T(1,128)}', space=vmem, size = 0x9000, scoped, tag = 'internal scratch']
  %s0 = inlined_call_operand.hbm [shape: f32[16,128], index: 0, kind: input, shape index: {}]
  %s1 = inlined_call_operand.hbm [shape: f32[1,8,128], index: 1, kind: output, shape index: {0}]
  %s2 = inlined_call_operand.hbm [shape: f32[1,8,128], index: 2, kind: output, shape index: {1}]
  %3 = xla_tuple %s1, %s2
  %s4 = sld [smem:[#allocation0]]
  $region30: #{tpu_custom_call.1} parent=0
    _
  %s6 = ssub.s32 1, %s4
  %s7 = scalar_select 0, %s6, %s4
  $region1: #{tpu_custom_call.1} parent=0
    #allocation2 [shape = 'u8[8192]{0}', space=vmem, size = 0x2000, scoped, tag = 'input window, operand 0, single buffered']
    #allocation3 [shape = 's32[1]{0}', space=sflag, size = 0x4, scoped, tag = 'scoped memory for tpu_custom_call.1']
    #allocation4 [shape = 's32[1]{0}', space=sflag, size = 0x4, scoped, tag = 'scoped memory for tpu_custom_call.1']
    #allocation5 [shape = 'u8[4096]{0}', space=vmem, size = 0x1000, scoped, tag = 'output window, operand 0, single buffered']
    #allocation6 [shape = 'u8[4096]{0}', space=vmem, size = 0x1000, scoped, tag = 'output window, operand 1, single buffered']
    #allocation7 [shape = 's32[1]{0}', space=sflag, size = 0x4, scoped, tag = 'scoped memory for tpu_custom_call.1']
    %8 = vsyncpa [#allocation3], 0
    %9 = vsyncpa [#allocation4], 0
    %10 = vsyncpa [#allocation7], 0
    // Predicated region
    $region2: #{tpu_custom_call.1} parent=1 // pred_check
      _
    $region3: #{tpu_custom_call.1} parent=1 // pred_check_branch
      %12 = sbr.rel (0) target = $region5
    $region4: #{tpu_custom_call.1} parent=1 // pred_region
      %s13 = sadd.s32 0, 0
      %s14 = smul.u32 2, %s13
      %16 = vsyncadd [#allocation3], 0
      %s17 = smul.addr %s14, 8
      %s18 = scalar_lea.hbm %s0, %s17
      %s19 = sshll.u32 %s18, 4
      %s20 = int_to_ptr.hbm [resolvable:$true] %s19
      %s21 = sshll.u32 [#allocation2], 4
      %s22 = int_to_ptr.vmem [resolvable:$true] %s21
      %27 = dma.hbm_to_vmem [thread:$0]  %s20, 256, %s22, [#allocation3], 128, 128, 8
    $region5: #{tpu_custom_call.1} parent=1 // pred_fallthru
      _
    // Predicated region
    $region6: #{tpu_custom_call.1} parent=1 // pred_check
      _
    $region7: #{tpu_custom_call.1} parent=1 // pred_check_branch
      %29 = sbr.rel (0) target = $region9
    $region8: #{tpu_custom_call.1} parent=1 // pred_region
      %31 = dma.done [#allocation3], 256
    $region9: #{tpu_custom_call.1} parent=1 // pred_fallthru
      _
    %s32 = sadd.s32 0, 0
    %s33 = smul.u32 2, %s32
    %p34 = scmp.eq.s32.totalorder 0, 0
    // Predicated region
    $region10: #{tpu_custom_call.1} parent=1 // pred_check
      %p35 = pneg %p34
    $region11: #{tpu_custom_call.1} parent=1 // pred_check_branch
      %37 = sbr.rel (%p35) target = $region13
    $region12: #{tpu_custom_call.1} parent=1 // pred_region
      %38 = vst [vmem:[#allocation5] sm:$0xff] inf
      %39 = vst [vmem:[#allocation6] sm:$0xff] -inf
    $region13: #{tpu_custom_call.1} parent=1 // pred_fallthru
      _
    %v40 = vld [vmem:[#allocation2] sm:$0xff]
    %v41 = vld [vmem:[#allocation2 + $0x8] sm:$0xff]
    %v42 = vmin.f32 %v40, %v41
    %v43 = vmax.f32 %v40, %v41
    %v44 = vld [vmem:[#allocation5] sm:$0xff]
    %v45 = vmin.f32 %v44, %v42
    %46 = vst [vmem:[#allocation5] sm:$0xff] %v45
    %v47 = vld [vmem:[#allocation6] sm:$0xff]
    %v48 = vmax.f32 %v47, %v43
    %49 = vst [vmem:[#allocation6] sm:$0xff] %v48
    // Predicated region
    $region14: #{tpu_custom_call.1} parent=1 // pred_check
      _
    $region15: #{tpu_custom_call.1} parent=1 // pred_check_branch
      %51 = sbr.rel (0) target = $region17
    $region16: #{tpu_custom_call.1} parent=1 // pred_region
      %53 = vsyncadd [#allocation4], 0
      %s55 = sshll.u32 [#allocation5], 4
      %s56 = int_to_ptr.vmem [resolvable:$true] %s55
      %s57 = sshll.u32 %s1, 4
      %s58 = int_to_ptr.hbm [resolvable:$true] %s57
      %60 = dma.vmem_to_hbm [thread:$0]  %s56, 128, %s58, [#allocation4]
    $region17: #{tpu_custom_call.1} parent=1 // pred_fallthru
      _
    // Predicated region
    $region18: #{tpu_custom_call.1} parent=1 // pred_check
      _
    $region19: #{tpu_custom_call.1} parent=1 // pred_check_branch
      %62 = sbr.rel (0) target = $region21
    $region20: #{tpu_custom_call.1} parent=1 // pred_region
      %64 = vsyncadd [#allocation7], 0
      %s66 = sshll.u32 [#allocation6], 4
      %s67 = int_to_ptr.vmem [resolvable:$true] %s66
      %s68 = sshll.u32 %s2, 4
      %s69 = int_to_ptr.hbm [resolvable:$true] %s68
      %71 = dma.vmem_to_hbm [thread:$0]  %s67, 128, %s69, [#allocation7]
    $region21: #{tpu_custom_call.1} parent=1 // pred_fallthru
      _
    // Predicated region
    $region22: #{tpu_custom_call.1} parent=1 // pred_check
      _
    $region23: #{tpu_custom_call.1} parent=1 // pred_check_branch
      %73 = sbr.rel (0) target = $region25
    $region24: #{tpu_custom_call.1} parent=1 // pred_region
      %75 = dma.done [#allocation4], 128
    $region25: #{tpu_custom_call.1} parent=1 // pred_fallthru
      _
    // Predicated region
    $region26: #{tpu_custom_call.1} parent=1 // pred_check
      _
    $region27: #{tpu_custom_call.1} parent=1 // pred_check_branch
      %77 = sbr.rel (0) target = $region29
    $region28: #{tpu_custom_call.1} parent=1 // pred_region
      %79 = dma.done [#allocation7], 128
    $region29: #{tpu_custom_call.1} parent=1 // pred_fallthru
      _
    %80 = vsyncpa [#allocation3], 1
    %81 = vsyncpa [#allocation4], 1
    %82 = vsyncpa [#allocation7], 1

</llo_original>
